<compile_context>
chip_gen: v7x
topology: tpu7x:2x2x1
jax: 0.10.0
libtpu: 0.0.40
codegen_flags: <defaults>
</compile_context>

<pallas_src>
import functools

import jax
import jax.numpy as jnp
from jax.experimental import pallas as pl
from jax.experimental.pallas import tpu as pltpu

OUT_PAD = 128          # lane-dense padded class dimension
NEG_BIG = -1e30        # bias for padded class columns -> exp() underflows to 0


def net_kernel(
    x_ref,
    w1_ref, b1_ref,    # conv1 (as dense) with BN1 folded in
    w2_ref, b2_ref,    # conv2 (as dense) with BN2 folded in
    w3_ref, b3_ref,    # fc1 with BN4 folded in
    w4_ref, b4_ref,    # fc2 with BN5 folded in
    w5_ref, b5_ref,    # fc3 (classes padded to OUT_PAD lanes)
    o_ref,
):
    # conv1 -> BN1 -> ReLU   (maxpool1 / dropout1 identity); BN folded into W/b.
    h = jnp.dot(x_ref[...], w1_ref[...], preferred_element_type=jnp.float32) + b1_ref[...]
    h = jnp.maximum(h, 0.0)

    # conv2 -> BN2 -> ReLU   (maxpool2 / dropout2 identity); flatten no-op for L=1.
    h = jnp.dot(h.astype(jnp.bfloat16), w2_ref[...], preferred_element_type=jnp.float32) + b2_ref[...]
    h = jnp.maximum(h, 0.0)

    # fc1 -> BN4 -> ReLU   (dropout4 identity)
    h = jnp.dot(h.astype(jnp.bfloat16), w3_ref[...], preferred_element_type=jnp.float32) + b3_ref[...]
    h = jnp.maximum(h, 0.0)

    # fc2 -> BN5 -> ReLU   (dropout5 identity)
    h = jnp.dot(h.astype(jnp.bfloat16), w4_ref[...], preferred_element_type=jnp.float32) + b4_ref[...]
    h = jnp.maximum(h, 0.0)

    # fc3 -> log_softmax over classes. Padded class columns carry bias -1e30 so
    # exp(z) there is exactly 0; the real columns get the correct log-softmax.
    logits = jnp.dot(h.astype(jnp.bfloat16), w5_ref[...], preferred_element_type=jnp.float32) + b5_ref[...]
    m = jnp.max(logits, axis=1, keepdims=True)
    z = logits - m
    lse = jnp.log(jnp.sum(jnp.exp(z), axis=1, keepdims=True))
    o_ref[...] = z - lse


def make_params(key, num_channels, classes):
    """Synthetic eval-mode parameters with the BatchNorm affine FOLDED into W/b.

    Weights are stored transposed (F_in, F_out) in bf16 for the MXU; biases are
    (1, F_out) f32 rows. Returns 10 arrays: [w1,b1,w2,b2,w3,b3,w4,b4,w5,b5].
    """
    assert classes <= OUT_PAD
    dims = [(num_channels, 150), (150, 180), (180, 60), (60, 40), (40, classes)]
    eps = 1e-5
    params = []
    for li, (fin, fout) in enumerate(dims):
        key, kw, kb, kg, kbe, km, kv = jax.random.split(key, 7)
        w = jax.random.normal(kw, (fin, fout), jnp.float32) * (1.0 / jnp.sqrt(fin))
        b = jax.random.normal(kb, (1, fout), jnp.float32) * 0.1
        if li < 4:  # layers followed by a BatchNorm1d -> fold the affine in.
            gamma = 1.0 + 0.1 * jax.random.normal(kg, (1, fout), jnp.float32)
            beta = 0.1 * jax.random.normal(kbe, (1, fout), jnp.float32)
            mean = 0.1 * jax.random.normal(km, (1, fout), jnp.float32)
            var = jnp.abs(jax.random.normal(kv, (1, fout), jnp.float32)) + 0.5
            scale = gamma / jnp.sqrt(var + eps)            # (1, fout)
            w = w * scale                                  # column-wise fold
            b = (b - mean) * scale + beta
        else:
            # Final layer: pad the class dimension to OUT_PAD lanes so the output
            # store is lane-dense; padded columns get a huge negative bias.
            w = jnp.pad(w, ((0, 0), (0, OUT_PAD - fout)))
            b = jnp.concatenate(
                [b, jnp.full((1, OUT_PAD - fout), NEG_BIG, jnp.float32)], axis=1)
        params.extend([w.astype(jnp.bfloat16), b.astype(jnp.float32)])
    return params


@functools.partial(jax.jit, static_argnames=("classes",))
def net_forward(x, params, classes):
    B, C = x.shape
    # TILE_B: >= 512 (multiple of 8) for throughput; shrink for tiny test batches.
    tile_b = min(512, int(pl.cdiv(max(B, 1), 8)) * 8)
    b_pad = int(pl.cdiv(B, tile_b)) * tile_b

    # bf16 input for the MXU; zero-pad the batch to a multiple of the tile.
    x_pad = jnp.zeros((b_pad, C), jnp.bfloat16).at[:B].set(x.astype(jnp.bfloat16))

    vmem = pltpu.MemorySpace.VMEM
    # Weights/biases: full-array blocks, constant index_map -> DMA'd once, resident
    # in VMEM across all grid steps.
    weight_specs = [
        pl.BlockSpec(p.shape, lambda i: (0, 0), memory_space=vmem) for p in params
    ]

    out = pl.pallas_call(
        net_kernel,
        out_shape=jax.ShapeDtypeStruct((b_pad, OUT_PAD), jnp.float32),
        grid=(b_pad // tile_b,),
        in_specs=[pl.BlockSpec((tile_b, C), lambda i: (i, 0), memory_space=vmem)]
        + weight_specs,
        out_specs=pl.BlockSpec((tile_b, OUT_PAD), lambda i: (i, 0), memory_space=vmem),
        compiler_params=pltpu.CompilerParams(
            # Batch tiles are independent -> shard across both v7x TensorCores.
            dimension_semantics=("parallel",),
            # Footprint at TILE_B=512 is ~1 MiB; 32 MiB is safe on v5e/v6e/v7x.
            vmem_limit_bytes=32 * 1024 * 1024,
        ),
    )(x_pad, *params)

    return out[:B, :classes]


def net_reference(x, params, classes):
    """Pure-JAX reference using the same folded bf16 weights / f32 accumulation."""
    w1, b1, w2, b2, w3, b3, w4, b4, w5, b5 = params
    h = jnp.maximum(jnp.dot(x.astype(jnp.bfloat16), w1, preferred_element_type=jnp.float32) + b1, 0.0)
    h = jnp.maximum(jnp.dot(h.astype(jnp.bfloat16), w2, preferred_element_type=jnp.float32) + b2, 0.0)
    h = jnp.maximum(jnp.dot(h.astype(jnp.bfloat16), w3, preferred_element_type=jnp.float32) + b3, 0.0)
    h = jnp.maximum(jnp.dot(h.astype(jnp.bfloat16), w4, preferred_element_type=jnp.float32) + b4, 0.0)
    logits = jnp.dot(h.astype(jnp.bfloat16), w5, preferred_element_type=jnp.float32) + b5
    logits = logits[:, :classes]
    return jax.nn.log_softmax(logits, axis=1)


if __name__ == "__main__":
    # TODO(synk): dropout layers are identity (inference semantics); training-mode
    # dropout / batch-statistics BN are not reproduced.
    num_channels = 8   # flow-feature count per sample
    classes = 5
    batch = 4

    key = jax.random.PRNGKey(0)
    key, kx = jax.random.split(key)
    x = jax.random.normal(kx, (batch, num_channels), jnp.float32)

    params = make_params(key, num_channels, classes)

    out = net_forward(x, params, classes)
    out = jax.block_until_ready(out)

    ref = net_reference(x, params, classes)
    assert out.shape == (batch, classes), out.shape
    max_err = float(jnp.max(jnp.abs(out - ref)))
    assert max_err < 2e-3, f"Pallas output mismatch vs reference (max abs err {max_err})"

    print("KERNEL_OK")
</pallas_src>

<mosaic_0001>
module attributes {stable_mosaic.version = 11 : i64} {
  func.func @net_kernel(%arg0: i32, %arg1: memref<8x8xbf16, #tpu.memory_space<vmem>>, %arg2: memref<8x150xbf16, #tpu.memory_space<vmem>>, %arg3: memref<1x150xf32, #tpu.memory_space<vmem>>, %arg4: memref<150x180xbf16, #tpu.memory_space<vmem>>, %arg5: memref<1x180xf32, #tpu.memory_space<vmem>>, %arg6: memref<180x60xbf16, #tpu.memory_space<vmem>>, %arg7: memref<1x60xf32, #tpu.memory_space<vmem>>, %arg8: memref<60x40xbf16, #tpu.memory_space<vmem>>, %arg9: memref<1x40xf32, #tpu.memory_space<vmem>>, %arg10: memref<40x128xbf16, #tpu.memory_space<vmem>>, %arg11: memref<1x128xf32, #tpu.memory_space<vmem>>, %arg12: memref<8x128xf32, #tpu.memory_space<vmem>>) attributes {dimension_semantics = [#tpu.dimension_semantics<parallel>], iteration_bounds = array<i64: 1>, scalar_prefetch = 0 : i64, scratch_operands = 0 : i64, tpu.core_type = #tpu.core_type<tc>, window_params = [{transform_indices = @transform_0, window_bounds = array<i64: 8, 8>}, {pipeline_mode = #tpu.pipeline_mode<synchronous>, transform_indices = @transform_1, window_bounds = array<i64: 8, 150>}, {pipeline_mode = #tpu.pipeline_mode<synchronous>, transform_indices = @transform_2, window_bounds = array<i64: 1, 150>}, {pipeline_mode = #tpu.pipeline_mode<synchronous>, transform_indices = @transform_3, window_bounds = array<i64: 150, 180>}, {pipeline_mode = #tpu.pipeline_mode<synchronous>, transform_indices = @transform_4, window_bounds = array<i64: 1, 180>}, {pipeline_mode = #tpu.pipeline_mode<synchronous>, transform_indices = @transform_5, window_bounds = array<i64: 180, 60>}, {pipeline_mode = #tpu.pipeline_mode<synchronous>, transform_indices = @transform_6, window_bounds = array<i64: 1, 60>}, {pipeline_mode = #tpu.pipeline_mode<synchronous>, transform_indices = @transform_7, window_bounds = array<i64: 60, 40>}, {pipeline_mode = #tpu.pipeline_mode<synchronous>, transform_indices = @transform_8, window_bounds = array<i64: 1, 40>}, {pipeline_mode = #tpu.pipeline_mode<synchronous>, transform_indices = @transform_9, window_bounds = array<i64: 40, 128>}, {pipeline_mode = #tpu.pipeline_mode<synchronous>, transform_indices = @transform_10, window_bounds = array<i64: 1, 128>}, {transform_indices = @transform_11, window_bounds = array<i64: 8, 128>}]} {
    %c0 = arith.constant 0 : index
    %c0_0 = arith.constant 0 : index
    %0 = vector.load %arg1[%c0, %c0_0] : memref<8x8xbf16, #tpu.memory_space<vmem>>, vector<8x8xbf16>
    %c0_1 = arith.constant 0 : index
    %c0_2 = arith.constant 0 : index
    %1 = vector.load %arg2[%c0_1, %c0_2] : memref<8x150xbf16, #tpu.memory_space<vmem>>, vector<8x150xbf16>
    %cst = arith.constant dense<0.000000e+00> : vector<8x150xf32>
    %2 = tpu.matmul %0, %1, %cst {dimension_numbers = #tpu.dot_dimension_numbers<[1], [0], [0], [1], [0, 0, 1, 1], [], []>} : vector<8x8xbf16>, vector<8x150xbf16>, vector<8x150xf32> -> vector<8x150xf32>
    %c0_3 = arith.constant 0 : index
    %c0_4 = arith.constant 0 : index
    %3 = vector.load %arg3[%c0_3, %c0_4] : memref<1x150xf32, #tpu.memory_space<vmem>>, vector<1x150xf32>
    %4 = vector.broadcast %3 : vector<1x150xf32> to vector<8x150xf32>
    %5 = arith.addf %2, %4 : vector<8x150xf32>
    %cst_5 = arith.constant 0.000000e+00 : f32
    %6 = vector.broadcast %cst_5 : f32 to vector<8x150xf32>
    %7 = arith.maximumf %5, %6 : vector<8x150xf32>
    %8 = arith.truncf %7 : vector<8x150xf32> to vector<8x150xbf16>
    %c0_6 = arith.constant 0 : index
    %c0_7 = arith.constant 0 : index
    %9 = vector.load %arg4[%c0_6, %c0_7] : memref<150x180xbf16, #tpu.memory_space<vmem>>, vector<150x180xbf16>
    %cst_8 = arith.constant dense<0.000000e+00> : vector<8x180xf32>
    %10 = tpu.matmul %8, %9, %cst_8 {dimension_numbers = #tpu.dot_dimension_numbers<[1], [0], [0], [1], [0, 0, 1, 1], [], []>} : vector<8x150xbf16>, vector<150x180xbf16>, vector<8x180xf32> -> vector<8x180xf32>
    %c0_9 = arith.constant 0 : index
    %c0_10 = arith.constant 0 : index
    %11 = vector.load %arg5[%c0_9, %c0_10] : memref<1x180xf32, #tpu.memory_space<vmem>>, vector<1x180xf32>
    %12 = vector.broadcast %11 : vector<1x180xf32> to vector<8x180xf32>
    %13 = arith.addf %10, %12 : vector<8x180xf32>
    %cst_11 = arith.constant 0.000000e+00 : f32
    %14 = vector.broadcast %cst_11 : f32 to vector<8x180xf32>
    %15 = arith.maximumf %13, %14 : vector<8x180xf32>
    %16 = arith.truncf %15 : vector<8x180xf32> to vector<8x180xbf16>
    %c0_12 = arith.constant 0 : index
    %c0_13 = arith.constant 0 : index
    %17 = vector.load %arg6[%c0_12, %c0_13] : memref<180x60xbf16, #tpu.memory_space<vmem>>, vector<180x60xbf16>
    %cst_14 = arith.constant dense<0.000000e+00> : vector<8x60xf32>
    %18 = tpu.matmul %16, %17, %cst_14 {dimension_numbers = #tpu.dot_dimension_numbers<[1], [0], [0], [1], [0, 0, 1, 1], [], []>} : vector<8x180xbf16>, vector<180x60xbf16>, vector<8x60xf32> -> vector<8x60xf32>
    %c0_15 = arith.constant 0 : index
    %c0_16 = arith.constant 0 : index
    %19 = vector.load %arg7[%c0_15, %c0_16] : memref<1x60xf32, #tpu.memory_space<vmem>>, vector<1x60xf32>
    %20 = vector.broadcast %19 : vector<1x60xf32> to vector<8x60xf32>
    %21 = arith.addf %18, %20 : vector<8x60xf32>
    %cst_17 = arith.constant 0.000000e+00 : f32
    %22 = vector.broadcast %cst_17 : f32 to vector<8x60xf32>
    %23 = arith.maximumf %21, %22 : vector<8x60xf32>
    %24 = arith.truncf %23 : vector<8x60xf32> to vector<8x60xbf16>
    %c0_18 = arith.constant 0 : index
    %c0_19 = arith.constant 0 : index
    %25 = vector.load %arg8[%c0_18, %c0_19] : memref<60x40xbf16, #tpu.memory_space<vmem>>, vector<60x40xbf16>
    %cst_20 = arith.constant dense<0.000000e+00> : vector<8x40xf32>
    %26 = tpu.matmul %24, %25, %cst_20 {dimension_numbers = #tpu.dot_dimension_numbers<[1], [0], [0], [1], [0, 0, 1, 1], [], []>} : vector<8x60xbf16>, vector<60x40xbf16>, vector<8x40xf32> -> vector<8x40xf32>
    %c0_21 = arith.constant 0 : index
    %c0_22 = arith.constant 0 : index
    %27 = vector.load %arg9[%c0_21, %c0_22] : memref<1x40xf32, #tpu.memory_space<vmem>>, vector<1x40xf32>
    %28 = vector.broadcast %27 : vector<1x40xf32> to vector<8x40xf32>
    %29 = arith.addf %26, %28 : vector<8x40xf32>
    %cst_23 = arith.constant 0.000000e+00 : f32
    %30 = vector.broadcast %cst_23 : f32 to vector<8x40xf32>
    %31 = arith.maximumf %29, %30 : vector<8x40xf32>
    %32 = arith.truncf %31 : vector<8x40xf32> to vector<8x40xbf16>
    %c0_24 = arith.constant 0 : index
    %c0_25 = arith.constant 0 : index
    %33 = vector.load %arg10[%c0_24, %c0_25] : memref<40x128xbf16, #tpu.memory_space<vmem>>, vector<40x128xbf16>
    %cst_26 = arith.constant dense<0.000000e+00> : vector<8x128xf32>
    %34 = tpu.matmul %32, %33, %cst_26 {dimension_numbers = #tpu.dot_dimension_numbers<[1], [0], [0], [1], [0, 0, 1, 1], [], []>} : vector<8x40xbf16>, vector<40x128xbf16>, vector<8x128xf32> -> vector<8x128xf32>
    %c0_27 = arith.constant 0 : index
    %c0_28 = arith.constant 0 : index
    %35 = vector.load %arg11[%c0_27, %c0_28] : memref<1x128xf32, #tpu.memory_space<vmem>>, vector<1x128xf32>
    %36 = vector.broadcast %35 : vector<1x128xf32> to vector<8x128xf32>
    %37 = arith.addf %34, %36 : vector<8x128xf32>
    %cst_29 = arith.constant dense<0xFF800000> : vector<8xf32>
    %38 = vector.multi_reduction <maximumf>, %37, %cst_29 [1] : vector<8x128xf32> to vector<8xf32>
    %39 = vector.shape_cast %38 : vector<8xf32> to vector<8x1xf32>
    %40 = vector.broadcast %39 : vector<8x1xf32> to vector<8x128xf32>
    %41 = arith.subf %37, %40 : vector<8x128xf32>
    %42 = math.exp %41 : vector<8x128xf32>
    %cst_30 = arith.constant dense<0.000000e+00> : vector<8xf32>
    %43 = vector.multi_reduction <add>, %42, %cst_30 [1] : vector<8x128xf32> to vector<8xf32>
    %44 = vector.shape_cast %43 : vector<8xf32> to vector<8x1xf32>
    %45 = math.log %44 : vector<8x1xf32>
    %46 = vector.broadcast %45 : vector<8x1xf32> to vector<8x128xf32>
    %47 = arith.subf %41, %46 : vector<8x128xf32>
    %c0_31 = arith.constant 0 : index
    %c0_32 = arith.constant 0 : index
    %48 = vector.load %arg12[%c0_31, %c0_32] : memref<8x128xf32, #tpu.memory_space<vmem>>, vector<8x128xf32>
    tpu.vector_store %arg12[%c0_31, %c0_32], %47 {strides = array<i32>} : memref<8x128xf32, #tpu.memory_space<vmem>>, vector<8x128xf32>,
    return
  }
  func.func @transform_0(%arg0: i32) -> (i32, i32) {
    %c0_i32 = arith.constant 0 : i32
    %c0_i32_0 = arith.constant 0 : i32
    return %arg0, %c0_i32 : i32, i32
  }
  func.func @transform_1(%arg0: i32) -> (i32, i32) {
    %c0_i32 = arith.constant 0 : i32
    %c0_i32_0 = arith.constant 0 : i32
    %c0_i32_1 = arith.constant 0 : i32
    return %c0_i32, %c0_i32_0 : i32, i32
  }
  func.func @transform_2(%arg0: i32) -> (i32, i32) {
    %c0_i32 = arith.constant 0 : i32
    %c0_i32_0 = arith.constant 0 : i32
    %c0_i32_1 = arith.constant 0 : i32
    return %c0_i32, %c0_i32_0 : i32, i32
  }
  func.func @transform_3(%arg0: i32) -> (i32, i32) {
    %c0_i32 = arith.constant 0 : i32
    %c0_i32_0 = arith.constant 0 : i32
    %c0_i32_1 = arith.constant 0 : i32
    return %c0_i32, %c0_i32_0 : i32, i32
  }
  func.func @transform_4(%arg0: i32) -> (i32, i32) {
    %c0_i32 = arith.constant 0 : i32
    %c0_i32_0 = arith.constant 0 : i32
    %c0_i32_1 = arith.constant 0 : i32
    return %c0_i32, %c0_i32_0 : i32, i32
  }
  func.func @transform_5(%arg0: i32) -> (i32, i32) {
    %c0_i32 = arith.constant 0 : i32
    %c0_i32_0 = arith.constant 0 : i32
    %c0_i32_1 = arith.constant 0 : i32
    return %c0_i32, %c0_i32_0 : i32, i32
  }
  func.func @transform_6(%arg0: i32) -> (i32, i32) {
    %c0_i32 = arith.constant 0 : i32
    %c0_i32_0 = arith.constant 0 : i32
    %c0_i32_1 = arith.constant 0 : i32
    return %c0_i32, %c0_i32_0 : i32, i32
  }
  func.func @transform_7(%arg0: i32) -> (i32, i32) {
    %c0_i32 = arith.constant 0 : i32
    %c0_i32_0 = arith.constant 0 : i32
    %c0_i32_1 = arith.constant 0 : i32
    return %c0_i32, %c0_i32_0 : i32, i32
  }
  func.func @transform_8(%arg0: i32) -> (i32, i32) {
    %c0_i32 = arith.constant 0 : i32
    %c0_i32_0 = arith.constant 0 : i32
    %c0_i32_1 = arith.constant 0 : i32
    return %c0_i32, %c0_i32_0 : i32, i32
  }
  func.func @transform_9(%arg0: i32) -> (i32, i32) {
    %c0_i32 = arith.constant 0 : i32
    %c0_i32_0 = arith.constant 0 : i32
    %c0_i32_1 = arith.constant 0 : i32
    return %c0_i32, %c0_i32_0 : i32, i32
  }
  func.func @transform_10(%arg0: i32) -> (i32, i32) {
    %c0_i32 = arith.constant 0 : i32
    %c0_i32_0 = arith.constant 0 : i32
    %c0_i32_1 = arith.constant 0 : i32
    return %c0_i32, %c0_i32_0 : i32, i32
  }
  func.func @transform_11(%arg0: i32) -> (i32, i32) {
    %c0_i32 = arith.constant 0 : i32
    %c0_i32_0 = arith.constant 0 : i32
    return %arg0, %c0_i32 : i32, i32
  }
}

</mosaic_0001>

<llo_original>
// kernel: net_forward.1
$region0: #{net_forward.1}
  #allocation0 [shape = 'u32[]', space=smem, size = 0x4, offset = 0x4, fixed_abs, tag = 'smem constant byte address 0x4 - core index']
  #allocation1 [shape = 'u32[144,128]{1,0:T(1,128)}', space=vmem, size = 0x12000, scoped, tag = 'internal scratch']
  %s0 = inlined_call_operand.vmem [shape: bf16[8,8], index: 0, kind: input, shape index: {}]
  %s1 = inlined_call_operand.hbm [shape: bf16[8,150], index: 1, kind: input, shape index: {}]
  %s2 = inlined_call_operand.vmem [shape: f32[1,150], index: 2, kind: input, shape index: {}]
  %s3 = inlined_call_operand.vmem [shape: bf16[150,180], index: 3, kind: input, shape index: {}]
  %s4 = inlined_call_operand.hbm [shape: f32[1,180], index: 4, kind: input, shape index: {}]
  %s5 = inlined_call_operand.vmem [shape: bf16[180,60], index: 5, kind: input, shape index: {}]
  %s6 = inlined_call_operand.vmem [shape: f32[1,60], index: 6, kind: input, shape index: {}]
  %s7 = inlined_call_operand.vmem [shape: bf16[60,40], index: 7, kind: input, shape index: {}]
  %s8 = inlined_call_operand.vmem [shape: f32[1,40], index: 8, kind: input, shape index: {}]
  %s9 = inlined_call_operand.vmem [shape: bf16[40,128], index: 9, kind: input, shape index: {}]
  %s10 = inlined_call_operand.vmem [shape: f32[1,128], index: 10, kind: input, shape index: {}]
  %s11 = inlined_call_operand.vmem [shape: f32[8,128], index: 11, kind: output, shape index: {}]
  %s12 = sld [smem:[#allocation0]]
  $region62: #{net_forward.1} parent=0
    _
  %s14 = ssub.s32 1, %s12
  %s15 = scalar_select 0, %s14, %s12
  $region1: #{net_forward.1} parent=0
    #allocation2 [shape = 'u8[4096]{0}', space=vmem, size = 0x1000, scoped, tag = 'input window, operand 1, single buffered']
    #allocation3 [shape = 's32[1]{0}', space=sflag, size = 0x4, scoped, tag = 'scoped memory for net_forward.1']
    #allocation4 [shape = 'u8[1024]{0}', space=vmem, size = 0x400, scoped, tag = 'input window, operand 4, single buffered']
    #allocation5 [shape = 's32[1]{0}', space=sflag, size = 0x4, scoped, tag = 'scoped memory for net_forward.1']
    %16 = vsyncpa [#allocation3], 0
    %17 = vsyncpa [#allocation5], 0
    // Predicated region
    $region2: #{net_forward.1} parent=1 // pred_check
      _
    $region3: #{net_forward.1} parent=1 // pred_check_branch
      %19 = sbr.rel (0) target = $region5
    $region4: #{net_forward.1} parent=1 // pred_region
      _
    $region5: #{net_forward.1} parent=1 // pred_fallthru
      _
    // Predicated region
    $region6: #{net_forward.1} parent=1 // pred_check
      _
    $region7: #{net_forward.1} parent=1 // pred_check_branch
      %21 = sbr.rel (0) target = $region9
    $region8: #{net_forward.1} parent=1 // pred_region
      %s23 = ssub.s32 128, 128
      %24 = vsyncadd [#allocation3], %s23
      %s26 = sshll.u32 [#allocation2], 4
      %s27 = int_to_ptr.vmem [resolvable:$true] %s26
      %29 = dma.hbm_to_vmem [thread:$0]  %s1, 128, %s27, [#allocation3]
    $region9: #{net_forward.1} parent=1 // pred_fallthru
      _
    // Predicated region
    $region10: #{net_forward.1} parent=1 // pred_check
      _
    $region11: #{net_forward.1} parent=1 // pred_check_branch
      %31 = sbr.rel (0) target = $region13
    $region12: #{net_forward.1} parent=1 // pred_region
      _
    $region13: #{net_forward.1} parent=1 // pred_fallthru
      _
    // Predicated region
    $region14: #{net_forward.1} parent=1 // pred_check
      _
    $region15: #{net_forward.1} parent=1 // pred_check_branch
      %33 = sbr.rel (0) target = $region17
    $region16: #{net_forward.1} parent=1 // pred_region
      _
    $region17: #{net_forward.1} parent=1 // pred_fallthru
      _
    // Predicated region
    $region18: #{net_forward.1} parent=1 // pred_check
      _
    $region19: #{net_forward.1} parent=1 // pred_check_branch
      %35 = sbr.rel (0) target = $region21
    $region20: #{net_forward.1} parent=1 // pred_region
      %s37 = ssub.s32 32, 32
      %38 = vsyncadd [#allocation5], %s37
      %s40 = sshll.u32 [#allocation4], 4
      %s41 = int_to_ptr.vmem [resolvable:$true] %s40
      %43 = dma.hbm_to_vmem [thread:$0]  %s4, 32, %s41, [#allocation5]
    $region21: #{net_forward.1} parent=1 // pred_fallthru
      _
    // Predicated region
    $region22: #{net_forward.1} parent=1 // pred_check
      _
    $region23: #{net_forward.1} parent=1 // pred_check_branch
      %45 = sbr.rel (0) target = $region25
    $region24: #{net_forward.1} parent=1 // pred_region
      _
    $region25: #{net_forward.1} parent=1 // pred_fallthru
      _
    // Predicated region
    $region26: #{net_forward.1} parent=1 // pred_check
      _
    $region27: #{net_forward.1} parent=1 // pred_check_branch
      %47 = sbr.rel (0) target = $region29
    $region28: #{net_forward.1} parent=1 // pred_region
      _
    $region29: #{net_forward.1} parent=1 // pred_fallthru
      _
    // Predicated region
    $region30: #{net_forward.1} parent=1 // pred_check
      _
    $region31: #{net_forward.1} parent=1 // pred_check_branch
      %49 = sbr.rel (0) target = $region33
    $region32: #{net_forward.1} parent=1 // pred_region
      _
    $region33: #{net_forward.1} parent=1 // pred_fallthru
      _
    // Predicated region
    $region34: #{net_forward.1} parent=1 // pred_check
      _
    $region35: #{net_forward.1} parent=1 // pred_check_branch
      %51 = sbr.rel (0) target = $region37
    $region36: #{net_forward.1} parent=1 // pred_region
      _
    $region37: #{net_forward.1} parent=1 // pred_fallthru
      _
    // Predicated region
    $region38: #{net_forward.1} parent=1 // pred_check
      _
    $region39: #{net_forward.1} parent=1 // pred_check_branch
      %53 = sbr.rel (0) target = $region41
    $region40: #{net_forward.1} parent=1 // pred_region
      _
    $region41: #{net_forward.1} parent=1 // pred_fallthru
      _
    // Predicated region
    $region42: #{net_forward.1} parent=1 // pred_check
      _
    $region43: #{net_forward.1} parent=1 // pred_check_branch
      %55 = sbr.rel (0) target = $region45
    $region44: #{net_forward.1} parent=1 // pred_region
      _
    $region45: #{net_forward.1} parent=1 // pred_fallthru
      _
    // Predicated region
    $region46: #{net_forward.1} parent=1 // pred_check
      _
    $region47: #{net_forward.1} parent=1 // pred_check_branch
      %57 = sbr.rel (0) target = $region49
    $region48: #{net_forward.1} parent=1 // pred_region
      %58 = dma.done [#allocation3], 128
    $region49: #{net_forward.1} parent=1 // pred_fallthru
      _
    // Predicated region
    $region50: #{net_forward.1} parent=1 // pred_check
      _
    $region51: #{net_forward.1} parent=1 // pred_check_branch
      %60 = sbr.rel (0) target = $region53
    $region52: #{net_forward.1} parent=1 // pred_region
      %61 = dma.done [#allocation5], 32
    $region53: #{net_forward.1} parent=1 // pred_fallthru
      _
    %v63 = vld [vmem:[%s0] sm:$0xf]
    %v64 = vld [vmem:[#allocation2] sm:$0xff]
    %v65 = vld [vmem:[%s2] sm:$0x3]
    %v67 = vlaneseq
    %v68 = vshrl.u32 %v67, 7
    %v69 = vsub.s32 0, %v68
    %v70 = vrot.slane %v65, %v69
    %v71 = vlaneseq
    %v72 = vshrl.u32 %v71, 7
    %v73 = vsub.s32 1, %v72
    %v74 = vrot.slane %v65, %v73
    %v78 = vunpack.c.l.b16 %v64
    %v79 = vunpack.c.h.b16 %v64
    %v80 = vpack.c.b16 %v78, %v78
    %v81 = vpack.c.b16 %v79, %v79
    %vm82 = vcmask 64512
    %v84 = vsel %vm82, %v63, 0
    %vm86 = vcmask 1043456
    %v88 = vsel %vm86, %v80, 0
    %v91 = vsel %vm86, %v81, 0
    %93 = vmatprep.subr.bf16.mxu0 %v91
    %94 = vmatpush1.bf16.msra.mxu0 %v88
    %95 = vmatprep.subr.bf16.mxu0 0
    %96 = vmatpush1.bf16.msra.mxu0 0
    %97 = vmatprep.subr.bf16.mxu0 0
    %98 = vmatpush1.bf16.msra.mxu0 0
    %99 = vmatprep.subr.bf16.mxu0 0
    %100 = vmatpush1.bf16.msra.mxu0 0
    %101 = vmatprep.subr.bf16.mxu0 0
    %102 = vmatpush1.bf16.msra.mxu0 0
    %103 = vmatprep.subr.bf16.mxu0 0
    %104 = vmatpush1.bf16.msra.mxu0 0
    %105 = vmatprep.subr.bf16.mxu0 0
    %106 = vmatpush1.bf16.msra.mxu0 0
    %107 = vmatprep.subr.bf16.mxu0 0
    %108 = vmatpush1.bf16.msra.mxu0 0
    %109 = vmatprep.subr.bf16.mxu0 0
    %110 = vmatpush1.bf16.msra.mxu0 0
    %111 = vmatprep.subr.bf16.mxu0 0
    %112 = vmatpush1.bf16.msra.mxu0 0
    %113 = vmatprep.subr.bf16.mxu0 0
    %114 = vmatpush1.bf16.msra.mxu0 0
    %115 = vmatprep.subr.bf16.mxu0 0
    %116 = vmatpush1.bf16.msra.mxu0 0
    %117 = vmatprep.subr.bf16.mxu0 0
    %118 = vmatpush1.bf16.msra.mxu0 0
    %119 = vmatprep.subr.bf16.mxu0 0
    %120 = vmatpush1.bf16.msra.mxu0 0
    %121 = vmatprep.subr.bf16.mxu0 0
    %122 = vmatpush1.bf16.msra.mxu0 0
    %123 = vmatprep.subr.bf16.mxu0 0
    %124 = vmatpush1.bf16.msra.mxu0 0
    %125 = vmatprep.mubr.bf16.mxu0 0
    %126 = vmatmul.mubr.bf16.gmra.mrb[0].mxu0 %v84
    %v127 = vpop.f32.mrb[0].mxu0
    %v128 = vadd.f32 %v70, %v127
    %v129 = vpop.f32.mrb[0].mxu0
    %v130 = vadd.f32 %v74, %v129
    %v131 = vpop.f32.mrb[0].mxu0
    %v132 = vpop.f32.mrb[0].mxu0
    %133 = vdwg.mxu0
    %v134 = vmax.f32 %v128, 0.0
    %v135 = vmax.f32 %v130, 0.0
    %v136 = vpack.c.bf16 %v134, %v134
    %v137 = vpack.c.bf16 %v135, %v135
    %v138 = vld [vmem:[%s3] sm:$0xff]
    %v139 = vld [vmem:[%s3 + $0x8] sm:$0xff]
    %v140 = vld [vmem:[%s3 + $0x10] sm:$0xff]
    %v141 = vld [vmem:[%s3 + $0x18] sm:$0xff]
    %v142 = vld [vmem:[%s3 + $0x20] sm:$0xff]
    %v143 = vld [vmem:[%s3 + $0x28] sm:$0xff]
    %v144 = vld [vmem:[%s3 + $0x30] sm:$0xff]
    %v145 = vld [vmem:[%s3 + $0x38] sm:$0xff]
    %v146 = vld [vmem:[%s3 + $0x40] sm:$0xff]
    %v147 = vld [vmem:[%s3 + $0x48] sm:$0xff]
    %v148 = vld [vmem:[%s3 + $0x50] sm:$0xff]
    %v149 = vld [vmem:[%s3 + $0x58] sm:$0xff]
    %v150 = vld [vmem:[%s3 + $0x60] sm:$0xff]
    %v151 = vld [vmem:[%s3 + $0x68] sm:$0xff]
    %v152 = vld [vmem:[%s3 + $0x70] sm:$0xff]
    %v153 = vld [vmem:[%s3 + $0x78] sm:$0xff]
    %v154 = vld [vmem:[%s3 + $0x80] sm:$0xff]
    %v155 = vld [vmem:[%s3 + $0x88] sm:$0xff]
    %v156 = vld [vmem:[%s3 + $0x90] sm:$0x77]
    %v157 = vld [vmem:[#allocation4] sm:$0x3]
    %v159 = vlaneseq
    %v160 = vshrl.u32 %v159, 7
    %v161 = vsub.s32 0, %v160
    %v162 = vrot.slane %v157, %v161
    %v163 = vlaneseq
    %v164 = vshrl.u32 %v163, 7
    %v165 = vsub.s32 1, %v164
    %v166 = vrot.slane %v157, %v165
    %v188 = vunpack.c.l.b16 %v138
    %v189 = vunpack.c.h.b16 %v138
    %v190 = vunpack.c.l.b16 %v139
    %v191 = vunpack.c.h.b16 %v139
    %v192 = vunpack.c.l.b16 %v140
    %v193 = vunpack.c.h.b16 %v140
    %v194 = vunpack.c.l.b16 %v141
    %v195 = vunpack.c.h.b16 %v141
    %v196 = vunpack.c.l.b16 %v142
    %v197 = vunpack.c.h.b16 %v142
    %v198 = vunpack.c.l.b16 %v143
    %v199 = vunpack.c.h.b16 %v143
    %v200 = vunpack.c.l.b16 %v144
    %v201 = vunpack.c.h.b16 %v144
    %v202 = vunpack.c.l.b16 %v145
    %v203 = vunpack.c.h.b16 %v145
    %v204 = vunpack.c.l.b16 %v146
    %v205 = vunpack.c.h.b16 %v146
    %v206 = vunpack.c.l.b16 %v147
    %v207 = vunpack.c.h.b16 %v147
    %v208 = vunpack.c.l.b16 %v148
    %v209 = vunpack.c.h.b16 %v148
    %v210 = vunpack.c.l.b16 %v149
    %v211 = vunpack.c.h.b16 %v149
    %v212 = vunpack.c.l.b16 %v150
    %v213 = vunpack.c.h.b16 %v150
    %v214 = vunpack.c.l.b16 %v151
    %v215 = vunpack.c.h.b16 %v151
    %v216 = vunpack.c.l.b16 %v152
    %v217 = vunpack.c.h.b16 %v152
    %v218 = vunpack.c.l.b16 %v153
    %v219 = vunpack.c.h.b16 %v153
    %v220 = vunpack.c.l.b16 %v154
    %v221 = vunpack.c.h.b16 %v154
    %v222 = vunpack.c.l.b16 %v155
    %v223 = vunpack.c.h.b16 %v155
    %v224 = vunpack.c.l.b16 %v156
    %v225 = vunpack.c.h.b16 %v156
    %v226 = vpack.c.b16 %v190, %v188
    %v227 = vpack.c.b16 %v191, %v189
    %v228 = vpack.c.b16 %v194, %v192
    %v229 = vpack.c.b16 %v195, %v193
    %v230 = vpack.c.b16 %v198, %v196
    %v231 = vpack.c.b16 %v199, %v197
    %v232 = vpack.c.b16 %v202, %v200
    %v233 = vpack.c.b16 %v203, %v201
    %v234 = vpack.c.b16 %v206, %v204
    %v235 = vpack.c.b16 %v207, %v205
    %v236 = vpack.c.b16 %v210, %v208
    %v237 = vpack.c.b16 %v211, %v209
    %v238 = vpack.c.b16 %v214, %v212
    %v239 = vpack.c.b16 %v215, %v213
    %v240 = vpack.c.b16 %v218, %v216
    %v241 = vpack.c.b16 %v219, %v217
    %v242 = vpack.c.b16 %v222, %v220
    %v243 = vpack.c.b16 %v223, %v221
    %v244 = vpack.c.b16 %v224, %v224
    %v245 = vpack.c.b16 %v225, %v225
    %vm264 = vcmask 179200
    %v266 = vsel %vm264, %v137, 0
    %vm268 = vcmask 1042432
    %v270 = vsel %vm268, %v244, 0
    %v273 = vsel %vm268, %v245, 0
    %275 = vmatprep.subr.bf16.mxu0 %v227
    %276 = vmatpush1.bf16.msra.mxu0 %v226
    %277 = vmatprep.subr.bf16.mxu0 %v229
    %278 = vmatpush1.bf16.msra.mxu0 %v228
    %279 = vmatprep.subr.bf16.mxu0 %v231
    %280 = vmatpush1.bf16.msra.mxu0 %v230
    %281 = vmatprep.subr.bf16.mxu0 %v233
    %282 = vmatpush1.bf16.msra.mxu0 %v232
    %283 = vmatprep.subr.bf16.mxu0 %v235
    %284 = vmatpush1.bf16.msra.mxu0 %v234
    %285 = vmatprep.subr.bf16.mxu0 %v237
    %286 = vmatpush1.bf16.msra.mxu0 %v236
    %287 = vmatprep.subr.bf16.mxu0 %v239
    %288 = vmatpush1.bf16.msra.mxu0 %v238
    %289 = vmatprep.subr.bf16.mxu0 %v241
    %290 = vmatpush1.bf16.msra.mxu0 %v240
    %291 = vmatprep.subr.bf16.mxu0 %v243
    %292 = vmatpush1.bf16.msra.mxu0 %v242
    %293 = vmatprep.subr.bf16.mxu0 %v273
    %294 = vmatpush1.bf16.msra.mxu0 %v270
    %295 = vmatprep.subr.bf16.mxu0 0
    %296 = vmatpush1.bf16.msra.mxu0 0
    %297 = vmatprep.subr.bf16.mxu0 0
    %298 = vmatpush1.bf16.msra.mxu0 0
    %299 = vmatprep.subr.bf16.mxu0 0
    %300 = vmatpush1.bf16.msra.mxu0 0
    %301 = vmatprep.subr.bf16.mxu0 0
    %302 = vmatpush1.bf16.msra.mxu0 0
    %303 = vmatprep.subr.bf16.mxu0 0
    %304 = vmatpush1.bf16.msra.mxu0 0
    %305 = vmatprep.subr.bf16.mxu0 0
    %306 = vmatpush1.bf16.msra.mxu0 0
    %307 = vmatprep.mubr.bf16.mxu0 %v266
    %308 = vmatmul.mubr.bf16.gmra.mrb[0].mxu0 %v136
    %v309 = vpop.f32.mrb[0].mxu0
    %v310 = vadd.f32 %v162, %v309
    %v311 = vpop.f32.mrb[0].mxu0
    %v312 = vadd.f32 %v166, %v311
    %v313 = vpop.f32.mrb[0].mxu0
    %v314 = vpop.f32.mrb[0].mxu0
    %315 = vdwg.mxu0
    %v316 = vmax.f32 %v310, 0.0
    %v317 = vmax.f32 %v312, 0.0
    %v318 = vpack.c.bf16 %v316, %v316
    %v319 = vpack.c.bf16 %v317, %v317
    %v320 = vld [vmem:[%s5] sm:$0xf]
    %v321 = vld [vmem:[%s5 + $0x4] sm:$0xf]
    %v322 = vld [vmem:[%s5 + $0x8] sm:$0xf]
    %v323 = vld [vmem:[%s5 + $0xc] sm:$0xf]
    %v324 = vld [vmem:[%s5 + $0x10] sm:$0xf]
    %v325 = vld [vmem:[%s5 + $0x14] sm:$0xf]
    %v326 = vld [vmem:[%s5 + $0x18] sm:$0xf]
    %v327 = vld [vmem:[%s5 + $0x1c] sm:$0xf]
    %v328 = vld [vmem:[%s5 + $0x20] sm:$0xf]
    %v329 = vld [vmem:[%s5 + $0x24] sm:$0xf]
    %v330 = vld [vmem:[%s5 + $0x28] sm:$0xf]
    %v331 = vld [vmem:[%s5 + $0x2c] sm:$0xf]
    %v332 = vld [vmem:[%s5 + $0x30] sm:$0xf]
    %v333 = vld [vmem:[%s5 + $0x34] sm:$0xf]
    %v334 = vld [vmem:[%s5 + $0x38] sm:$0xf]
    %v335 = vld [vmem:[%s5 + $0x3c] sm:$0xf]
    %v336 = vld [vmem:[%s5 + $0x40] sm:$0xf]
    %v337 = vld [vmem:[%s5 + $0x44] sm:$0xf]
    %v338 = vld [vmem:[%s5 + $0x48] sm:$0xf]
    %v339 = vld [vmem:[%s5 + $0x4c] sm:$0xf]
    %v340 = vld [vmem:[%s5 + $0x50] sm:$0xf]
    %v341 = vld [vmem:[%s5 + $0x54] sm:$0xf]
    %v342 = vld [vmem:[%s5 + $0x58] sm:$0x3]
    %v343 = vld [vmem:[%s6] sm:$0x1]
    %v345 = vlaneseq
    %v346 = vshrl.u32 %v345, 7
    %v347 = vsub.s32 0, %v346
    %v348 = vrot.slane %v343, %v347
    %v373 = vunpack.c.l.b16 %v320
    %v374 = vunpack.c.l.b16 %v321
    %v375 = vunpack.c.l.b16 %v322
    %v376 = vunpack.c.l.b16 %v323
    %v377 = vunpack.c.l.b16 %v324
    %v378 = vunpack.c.l.b16 %v325
    %v379 = vunpack.c.l.b16 %v326
    %v380 = vunpack.c.l.b16 %v327
    %v381 = vunpack.c.l.b16 %v328
    %v382 = vunpack.c.l.b16 %v329
    %v383 = vunpack.c.l.b16 %v330
    %v384 = vunpack.c.l.b16 %v331
    %v385 = vunpack.c.l.b16 %v332
    %v386 = vunpack.c.l.b16 %v333
    %v387 = vunpack.c.l.b16 %v334
    %v388 = vunpack.c.l.b16 %v335
    %v389 = vunpack.c.l.b16 %v336
    %v390 = vunpack.c.l.b16 %v337
    %v391 = vunpack.c.l.b16 %v338
    %v392 = vunpack.c.l.b16 %v339
    %v393 = vunpack.c.l.b16 %v340
    %v394 = vunpack.c.l.b16 %v341
    %v395 = vunpack.c.l.b16 %v342
    %v396 = vpack.c.b16 %v374, %v373
    %v397 = vpack.c.b16 %v376, %v375
    %v398 = vpack.c.b16 %v378, %v377
    %v399 = vpack.c.b16 %v380, %v379
    %v400 = vpack.c.b16 %v382, %v381
    %v401 = vpack.c.b16 %v384, %v383
    %v402 = vpack.c.b16 %v386, %v385
    %v403 = vpack.c.b16 %v388, %v387
    %v404 = vpack.c.b16 %v390, %v389
    %v405 = vpack.c.b16 %v392, %v391
    %v406 = vpack.c.b16 %v394, %v393
    %v407 = vpack.c.b16 %v395, %v395
    %vm419 = vcmask 424960
    %v421 = vsel %vm419, %v319, 0
    %vm423 = vcmask 1041408
    %v425 = vsel %vm423, %v407, 0
    %427 = vmatprep.subr.bf16.mxu0 0
    %428 = vmatpush1.bf16.msra.mxu0 %v396
    %429 = vmatprep.subr.bf16.mxu0 0
    %430 = vmatpush1.bf16.msra.mxu0 %v397
    %431 = vmatprep.subr.bf16.mxu0 0
    %432 = vmatpush1.bf16.msra.mxu0 %v398
    %433 = vmatprep.subr.bf16.mxu0 0
    %434 = vmatpush1.bf16.msra.mxu0 %v399
    %435 = vmatprep.subr.bf16.mxu0 0
    %436 = vmatpush1.bf16.msra.mxu0 %v400
    %437 = vmatprep.subr.bf16.mxu0 0
    %438 = vmatpush1.bf16.msra.mxu0 %v401
    %439 = vmatprep.subr.bf16.mxu0 0
    %440 = vmatpush1.bf16.msra.mxu0 %v402
    %441 = vmatprep.subr.bf16.mxu0 0
    %442 = vmatpush1.bf16.msra.mxu0 %v403
    %443 = vmatprep.subr.bf16.mxu0 0
    %444 = vmatpush1.bf16.msra.mxu0 %v404
    %445 = vmatprep.subr.bf16.mxu0 0
    %446 = vmatpush1.bf16.msra.mxu0 %v405
    %447 = vmatprep.subr.bf16.mxu0 0
    %448 = vmatpush1.bf16.msra.mxu0 %v406
    %449 = vmatprep.subr.bf16.mxu0 0
    %450 = vmatpush1.bf16.msra.mxu0 %v425
    %451 = vmatprep.subr.bf16.mxu0 0
    %452 = vmatpush1.bf16.msra.mxu0 0
    %453 = vmatprep.subr.bf16.mxu0 0
    %454 = vmatpush1.bf16.msra.mxu0 0
    %455 = vmatprep.subr.bf16.mxu0 0
    %456 = vmatpush1.bf16.msra.mxu0 0
    %457 = vmatprep.subr.bf16.mxu0 0
    %458 = vmatpush1.bf16.msra.mxu0 0
    %459 = vmatprep.mubr.bf16.mxu0 %v421
    %460 = vmatmul.mubr.bf16.gmra.mrb[0].mxu0 %v318
    %v461 = vpop.f32.mrb[0].mxu0
    %v462 = vadd.f32 %v348, %v461
    %v463 = vpop.f32.mrb[0].mxu0
    %v464 = vpop.f32.mrb[0].mxu0
    %v465 = vpop.f32.mrb[0].mxu0
    %466 = vdwg.mxu0
    %v467 = vmax.f32 %v462, 0.0
    %v468 = vpack.c.bf16 %v467, %v467
    %v469 = vld [vmem:[%s7] sm:$0xf]
    %v470 = vld [vmem:[%s7 + $0x4] sm:$0xf]
    %v471 = vld [vmem:[%s7 + $0x8] sm:$0xf]
    %v472 = vld [vmem:[%s7 + $0xc] sm:$0xf]
    %v473 = vld [vmem:[%s7 + $0x10] sm:$0xf]
    %v474 = vld [vmem:[%s7 + $0x14] sm:$0xf]
    %v475 = vld [vmem:[%s7 + $0x18] sm:$0xf]
    %v476 = vld [vmem:[%s7 + $0x1c] sm:$0x3]
    %v477 = vld [vmem:[%s8] sm:$0x1]
    %v479 = vlaneseq
    %v480 = vshrl.u32 %v479, 7
    %v481 = vsub.s32 0, %v480
    %v482 = vrot.slane %v477, %v481
    %v492 = vunpack.c.l.b16 %v469
    %v493 = vunpack.c.l.b16 %v470
    %v494 = vunpack.c.l.b16 %v471
    %v495 = vunpack.c.l.b16 %v472
    %v496 = vunpack.c.l.b16 %v473
    %v497 = vunpack.c.l.b16 %v474
    %v498 = vunpack.c.l.b16 %v475
    %v499 = vunpack.c.l.b16 %v476
    %v500 = vpack.c.b16 %v493, %v492
    %v501 = vpack.c.b16 %v495, %v494
    %v502 = vpack.c.b16 %v497, %v496
    %v503 = vpack.c.b16 %v499, %v498
    %vm507 = vcmask 490496
    %v509 = vsel %vm507, %v468, 0
    %vm511 = vcmask 1045504
    %v513 = vsel %vm511, %v503, 0
    %515 = vmatprep.subr.bf16.mxu0 0
    %516 = vmatpush1.bf16.msra.mxu0 %v500
    %517 = vmatprep.subr.bf16.mxu0 0
    %518 = vmatpush1.bf16.msra.mxu0 %v501
    %519 = vmatprep.subr.bf16.mxu0 0
    %520 = vmatpush1.bf16.msra.mxu0 %v502
    %521 = vmatprep.subr.bf16.mxu0 0
    %522 = vmatpush1.bf16.msra.mxu0 %v513
    %523 = vmatprep.subr.bf16.mxu0 0
    %524 = vmatpush1.bf16.msra.mxu0 0
    %525 = vmatprep.subr.bf16.mxu0 0
    %526 = vmatpush1.bf16.msra.mxu0 0
    %527 = vmatprep.subr.bf16.mxu0 0
    %528 = vmatpush1.bf16.msra.mxu0 0
    %529 = vmatprep.subr.bf16.mxu0 0
    %530 = vmatpush1.bf16.msra.mxu0 0
    %531 = vmatprep.subr.bf16.mxu0 0
    %532 = vmatpush1.bf16.msra.mxu0 0
    %533 = vmatprep.subr.bf16.mxu0 0
    %534 = vmatpush1.bf16.msra.mxu0 0
    %535 = vmatprep.subr.bf16.mxu0 0
    %536 = vmatpush1.bf16.msra.mxu0 0
    %537 = vmatprep.subr.bf16.mxu0 0
    %538 = vmatpush1.bf16.msra.mxu0 0
    %539 = vmatprep.subr.bf16.mxu0 0
    %540 = vmatpush1.bf16.msra.mxu0 0
    %541 = vmatprep.subr.bf16.mxu0 0
    %542 = vmatpush1.bf16.msra.mxu0 0
    %543 = vmatprep.subr.bf16.mxu0 0
    %544 = vmatpush1.bf16.msra.mxu0 0
    %545 = vmatprep.subr.bf16.mxu0 0
    %546 = vmatpush1.bf16.msra.mxu0 0
    %547 = vmatprep.mubr.bf16.mxu0 0
    %548 = vmatmul.mubr.bf16.gmra.mrb[0].mxu0 %v509
    %v549 = vpop.f32.mrb[0].mxu0
    %v550 = vadd.f32 %v482, %v549
    %v551 = vpop.f32.mrb[0].mxu0
    %v552 = vpop.f32.mrb[0].mxu0
    %v553 = vpop.f32.mrb[0].mxu0
    %554 = vdwg.mxu0
    %v555 = vmax.f32 %v550, 0.0
    %v556 = vpack.c.bf16 %v555, %v555
    %v557 = vld [vmem:[%s9] sm:$0xf]
    %v558 = vld [vmem:[%s9 + $0x4] sm:$0xf]
    %v559 = vld [vmem:[%s9 + $0x8] sm:$0xf]
    %v560 = vld [vmem:[%s9 + $0xc] sm:$0xf]
    %v561 = vld [vmem:[%s9 + $0x10] sm:$0xf]
    %v562 = vld [vmem:[%s10] sm:$0x1]
    %v564 = vlaneseq
    %v565 = vshrl.u32 %v564, 7
    %v566 = vsub.s32 0, %v565
    %v567 = vrot.slane %v562, %v566
    %v574 = vunpack.c.l.b16 %v557
    %v575 = vunpack.c.l.b16 %v558
    %v576 = vunpack.c.l.b16 %v559
    %v577 = vunpack.c.l.b16 %v560
    %v578 = vunpack.c.l.b16 %v561
    %v579 = vpack.c.b16 %v575, %v574
    %v580 = vpack.c.b16 %v577, %v576
    %v581 = vpack.c.b16 %v578, %v578
    %vm584 = vcmask 326656
    %v586 = vsel %vm584, %v556, 0
    %v589 = vsel %vm86, %v581, 0
    %591 = vmatprep.subr.bf16.mxu0 0
    %592 = vmatpush1.bf16.msra.mxu0 %v579
    %593 = vmatprep.subr.bf16.mxu0 0
    %594 = vmatpush1.bf16.msra.mxu0 %v580
    %595 = vmatprep.subr.bf16.mxu0 0
    %596 = vmatpush1.bf16.msra.mxu0 %v589
    %597 = vmatprep.subr.bf16.mxu0 0
    %598 = vmatpush1.bf16.msra.mxu0 0
    %599 = vmatprep.subr.bf16.mxu0 0
    %600 = vmatpush1.bf16.msra.mxu0 0
    %601 = vmatprep.subr.bf16.mxu0 0
    %602 = vmatpush1.bf16.msra.mxu0 0
    %603 = vmatprep.subr.bf16.mxu0 0
    %604 = vmatpush1.bf16.msra.mxu0 0
    %605 = vmatprep.subr.bf16.mxu0 0
    %606 = vmatpush1.bf16.msra.mxu0 0
    %607 = vmatprep.subr.bf16.mxu0 0
    %608 = vmatpush1.bf16.msra.mxu0 0
    %609 = vmatprep.subr.bf16.mxu0 0
    %610 = vmatpush1.bf16.msra.mxu0 0
    %611 = vmatprep.subr.bf16.mxu0 0
    %612 = vmatpush1.bf16.msra.mxu0 0
    %613 = vmatprep.subr.bf16.mxu0 0
    %614 = vmatpush1.bf16.msra.mxu0 0
    %615 = vmatprep.subr.bf16.mxu0 0
    %616 = vmatpush1.bf16.msra.mxu0 0
    %617 = vmatprep.subr.bf16.mxu0 0
    %618 = vmatpush1.bf16.msra.mxu0 0
    %619 = vmatprep.subr.bf16.mxu0 0
    %620 = vmatpush1.bf16.msra.mxu0 0
    %621 = vmatprep.subr.bf16.mxu0 0
    %622 = vmatpush1.bf16.msra.mxu0 0
    %623 = vmatprep.mubr.bf16.mxu0 0
    %624 = vmatmul.mubr.bf16.gmra.mrb[0].mxu0 %v586
    %v625 = vpop.f32.mrb[0].mxu0
    %v626 = vadd.f32 %v567, %v625
    %v627 = vpop.f32.mrb[0].mxu0
    %v628 = vpop.f32.mrb[0].mxu0
    %v629 = vpop.f32.mrb[0].mxu0
    %630 = vdwg.mxu0
    %631 = vmax.xlane.f32.xlu0 %v626
    %v632 = vpop.xlane.xlu0 %631
    %v633 = vsub.f32 %v626, %v632
    %v634 = vmul.f32 %v633, 1.442695
    %v635 = vpow.pop %v634
    %636 = vadd.xlane.f32.xlu0 %v635
    %v637 = vpop.xlane.xlu0 %636
    %v638 = vlog2.pop %v637
    %v639 = vmul.f32 %v638, 0.6931472
    %v640 = vsub.f32 %v633, %v639
    %641 = vst [vmem:[%s11] sm:$0xff] %v640
    // Predicated region
    $region54: #{net_forward.1} parent=1 // pred_check
      _
    $region55: #{net_forward.1} parent=1 // pred_check_branch
      %643 = sbr.rel (0) target = $region57
    $region56: #{net_forward.1} parent=1 // pred_region
      _
    $region57: #{net_forward.1} parent=1 // pred_fallthru
      _
    // Predicated region
    $region58: #{net_forward.1} parent=1 // pred_check
      _
    $region59: #{net_forward.1} parent=1 // pred_check_branch
      %645 = sbr.rel (0) target = $region61
    $region60: #{net_forward.1} parent=1 // pred_region
      _
    $region61: #{net_forward.1} parent=1 // pred_fallthru
      _
    %646 = vsyncpa [#allocation3], 1
    %647 = vsyncpa [#allocation5], 1

</llo_original>
